<compile_context>
chip_gen: v7x
topology: tpu7x:2x2x1
jax: 0.10.0
libtpu: 0.0.40
codegen_flags: <defaults>
</compile_context>

<pallas_src>
import functools

import jax
import jax.numpy as jnp
from jax.experimental import pallas as pl
from jax.experimental.pallas import tpu as pltpu

LRELU_SLOPE = 0.1
_VMEM_LIMIT_BYTES = 40 * 1024 * 1024  # generous; worst-case blocks ~10 MiB


def get_padding(kernel_size, dilation=1):
    return (kernel_size * dilation - dilation) // 2


def _round_up(x, m):
    return ((x + m - 1) // m) * m


# ----------------------------------------------------------------------------
# Pallas kernel: one (Cout-tile, M-tile) grid step of a conv layer, lowered to
# a single GEMM with fused bias + leaky-relu epilogue.
#   x_ref : (TM, K*Cin_p) bf16   im2col rows (full receptive field per row)
#   w_ref : (K*Cin_p, TN) bf16   flattened per-tap weights for this Cout tile
#   b_ref : (1, TN)       f32    bias for this Cout tile
#   o_ref : (TM, TN)      bf16 / f32
# No accumulator scratch: one dot, one store.
# ----------------------------------------------------------------------------
def _gemm_bias_act_kernel(x_ref, w_ref, b_ref, o_ref, *, slope):
    acc = jnp.dot(x_ref[...], w_ref[...], preferred_element_type=jnp.float32)
    y = acc + b_ref[...]
    if slope is not None:
        y = jnp.where(y >= 0.0, y, jnp.float32(slope) * y)
    o_ref[...] = y.astype(o_ref.dtype)


def conv_layer(h, layer, *, slope, out_dtype):
    """One Conv2d((K,1),(s,1),pad=(p,0)) + bias (+ optional leaky-relu).

    h: (BP, H, Cin_p) bf16, channels already padded to layer['cin_p'].
    Returns (BP, Hout, Cout_p); padded channels come out as exact zeros
    (zero weight cols + zero bias, lrelu(0)=0) so they chain safely.
    """
    BP, H, Cin_p = h.shape
    assert Cin_p == layer["cin_p"]
    K, s, p = layer["K"], layer["stride"], layer["pad"]
    Cout_p = layer["cout_p"]
    KC = K * Cin_p

    Hout = (H + 2 * p - K) // s + 1

    # Glue-side im2col: tap k of output row m reads h_zeropad[m*s + k, :].
    # Each im2col row carries its full receptive field, so rows from
    # different bp's can be packed into one GEMM M dimension (no halos).
    # TODO(synk): for L1/L2 an in-kernel lane-concat of phase slices would
    # avoid the ~1.7x im2col HBM blow-up; benchmark before committing.
    hp = jnp.pad(h, ((0, 0), (p, p), (0, 0)))
    taps = [hp[:, k : k + s * (Hout - 1) + 1 : s, :] for k in range(K)]
    xcol = jnp.stack(taps, axis=2).reshape(BP * Hout, KC)  # row-major (b, m)

    # Balanced M tiles (<= 256 rows, multiple of 8, minimal padding).
    M = BP * Hout
    n_m = -(-M // 256)
    TM = _round_up(-(-M // n_m), 8)
    M_p = n_m * TM
    if M_p > M:
        xcol = jnp.pad(xcol, ((0, M_p - M), (0, 0)))

    # Lane-dense output-channel tile; 256 is safe on v5e/v6e/v7x.
    # (v6e-only tweak per review: TN=512 for Cout_p >= 512 also fits VMEM.)
    TN = min(256, Cout_p)

    # Cout tiles are the slowest grid axis and the weight/bias index_maps
    # depend only on it -> weight block DMA'd once per Cout tile, resident
    # across all M tiles.
    grid = (Cout_p // TN, M_p // TM)
    out = pl.pallas_call(
        functools.partial(_gemm_bias_act_kernel, slope=slope),
        out_shape=jax.ShapeDtypeStruct((M_p, Cout_p), out_dtype),
        grid=grid,
        in_specs=[
            pl.BlockSpec((TM, KC), lambda j, i: (i, 0)),
            pl.BlockSpec((KC, TN), lambda j, i: (0, j)),
            pl.BlockSpec((1, TN), lambda j, i: (0, j)),
        ],
        out_specs=pl.BlockSpec((TM, TN), lambda j, i: (i, j)),
        compiler_params=pltpu.CompilerParams(
            dimension_semantics=("parallel", "parallel"),
            vmem_limit_bytes=_VMEM_LIMIT_BYTES,
        ),
    )(xcol.astype(jnp.bfloat16), layer["w"], layer["b"])

    return out[:M].reshape(BP, Hout, Cout_p)


# ----------------------------------------------------------------------------
# Deterministic parameter construction (weight_norm folded into the weight).
# ----------------------------------------------------------------------------
def init_params(key, kernel_size=5, stride=3):
    pad = get_padding(5, 1)                  # = 2, as in the reference module
    cfgs = [
        (1, 32, kernel_size, stride, pad),
        (32, 128, kernel_size, stride, pad),
        (128, 512, kernel_size, stride, pad),
        (512, 1024, kernel_size, stride, pad),
        (1024, 1024, kernel_size, 1, 2),
    ]
    post_cfg = (1024, 1, 3, 1, 1)

    layers = []
    prev_cout_p = None
    for i, (cin, cout, K, s, p) in enumerate(cfgs + [post_cfg]):
        k1, k2, k3 = jax.random.split(jax.random.fold_in(key, i), 3)
        v = 0.02 * jax.random.normal(k1, (cout, cin, K), dtype=jnp.float32)
        g = 1.0 + 0.1 * jax.random.normal(k2, (cout,), dtype=jnp.float32)
        b = 0.01 * jax.random.normal(k3, (cout,), dtype=jnp.float32)
        # weight_norm: w = g * v / ||v||  (norm over (Cin, K) per out channel)
        norm = jnp.sqrt(jnp.sum(v * v, axis=(1, 2), keepdims=True)) + 1e-12
        w = (g.reshape(-1, 1, 1) / norm) * v                 # (Cout, Cin, K)
        w_kc = jnp.transpose(w, (2, 1, 0))                   # (K, Cin, Cout)

        cin_p = _round_up(cin, 8) if prev_cout_p is None else prev_cout_p
        cout_p = _round_up(cout, 128)                        # lane-dense channels
        w_pad = jnp.zeros((K, cin_p, cout_p), jnp.float32)
        w_pad = w_pad.at[:, :cin, :cout].set(w_kc)
        # Flatten taps into the contraction dim: row index = k*cin_p + c,
        # matching the glue-side im2col lane ordering.
        w_flat = w_pad.reshape(K * cin_p, cout_p).astype(jnp.bfloat16)
        b_pad = jnp.zeros((1, cout_p), jnp.float32).at[0, :cout].set(b)

        layers.append(dict(
            w=w_flat, b=b_pad,
            K=K, stride=s, pad=p,
            cin=cin, cin_p=cin_p, cout=cout, cout_p=cout_p))
        prev_cout_p = cout_p
    return dict(convs=layers[:-1], post=layers[-1])


# ----------------------------------------------------------------------------
# Full DiscriminatorP.forward
# ----------------------------------------------------------------------------
def discriminator_p_forward(x, params, period):
    B, C, T = x.shape
    if T % period != 0:
        n_pad = period - (T % period)
        x = jnp.pad(x, ((0, 0), (0, 0), (0, n_pad)), mode="reflect")
        T = T + n_pad
    H = T // period
    x = x.reshape(B, C, H, period)                 # NCHW, same as torch .view
    x = jnp.transpose(x, (0, 3, 2, 1))             # (B, period, H, C)
    h = x.reshape(B * period, H, C)

    first = params["convs"][0]
    h = jnp.pad(h, ((0, 0), (0, 0), (0, first["cin_p"] - C))).astype(jnp.bfloat16)

    fmap = []
    for layer in params["convs"]:
        h = conv_layer(h, layer, slope=LRELU_SLOPE, out_dtype=jnp.bfloat16)
        # fmaps returned in NCHW f32 to mirror the torch module; could stay
        # bf16 channels-last if the downstream loss accepted it (review #9).
        fm = h[:, :, :layer["cout"]].astype(jnp.float32)
        fm = fm.reshape(B, period, fm.shape[1], layer["cout"])
        fmap.append(jnp.transpose(fm, (0, 3, 2, 1)))

    post = params["post"]
    y = conv_layer(h, post, slope=None, out_dtype=jnp.float32)
    y = y[:, :, :post["cout"]]
    y = y.reshape(B, period, y.shape[1], post["cout"])
    y_nchw = jnp.transpose(y, (0, 3, 2, 1))                 # (B, 1, H', period)
    fmap.append(y_nchw)
    x_flat = y_nchw.reshape(B, -1)                          # torch.flatten(x, 1, -1)
    return x_flat, fmap


if __name__ == "__main__":
    key = jax.random.PRNGKey(0)
    period = 4
    params = init_params(key, kernel_size=5, stride=3)

    # Small input consistent with forward: (batch, channels=1, t) with
    # t % period != 0 so the reflect-pad branch is exercised.
    x = jax.random.normal(jax.random.fold_in(key, 999), (2, 1, 62),
                          dtype=jnp.float32)

    out, fmap = discriminator_p_forward(x, params, period)
    jax.block_until_ready(out)
    for f in fmap:
        jax.block_until_ready(f)
    print("KERNEL_OK")
</pallas_src>

<mosaic_0001>
module attributes {stable_mosaic.version = 11 : i64} {
  func.func @_gemm_bias_act_kernel(%arg0: i32, %arg1: i32, %arg2: memref<48x40xbf16, #tpu.memory_space<vmem>>, %arg3: memref<40x128xbf16, #tpu.memory_space<vmem>>, %arg4: memref<1x128xf32, #tpu.memory_space<vmem>>, %arg5: memref<48x128xbf16, #tpu.memory_space<vmem>>) attributes {dimension_semantics = [#tpu.dimension_semantics<parallel>, #tpu.dimension_semantics<parallel>], iteration_bounds = array<i64: 1, 1>, scalar_prefetch = 0 : i64, scratch_operands = 0 : i64, tpu.core_type = #tpu.core_type<tc>, window_params = [{transform_indices = @transform_0, window_bounds = array<i64: 48, 40>}, {transform_indices = @transform_1, window_bounds = array<i64: 40, 128>}, {transform_indices = @transform_2, window_bounds = array<i64: 1, 128>}, {transform_indices = @transform_3, window_bounds = array<i64: 48, 128>}]} {
    %c0 = arith.constant 0 : index
    %c0_0 = arith.constant 0 : index
    %0 = vector.load %arg2[%c0, %c0_0] : memref<48x40xbf16, #tpu.memory_space<vmem>>, vector<48x40xbf16>
    %c0_1 = arith.constant 0 : index
    %c0_2 = arith.constant 0 : index
    %1 = vector.load %arg3[%c0_1, %c0_2] : memref<40x128xbf16, #tpu.memory_space<vmem>>, vector<40x128xbf16>
    %cst = arith.constant dense<0.000000e+00> : vector<48x128xf32>
    %2 = tpu.matmul %0, %1, %cst {dimension_numbers = #tpu.dot_dimension_numbers<[1], [0], [0], [1], [0, 0, 1, 1], [], []>} : vector<48x40xbf16>, vector<40x128xbf16>, vector<48x128xf32> -> vector<48x128xf32>
    %c0_3 = arith.constant 0 : index
    %c0_4 = arith.constant 0 : index
    %3 = vector.load %arg4[%c0_3, %c0_4] : memref<1x128xf32, #tpu.memory_space<vmem>>, vector<1x128xf32>
    %4 = vector.broadcast %3 : vector<1x128xf32> to vector<48x128xf32>
    %5 = arith.addf %2, %4 : vector<48x128xf32>
    %cst_5 = arith.constant 0.000000e+00 : f32
    %6 = vector.broadcast %cst_5 : f32 to vector<48x128xf32>
    %7 = arith.cmpf oge, %5, %6 : vector<48x128xf32>
    %cst_6 = arith.constant 1.000000e-01 : f32
    %8 = vector.broadcast %cst_6 : f32 to vector<48x128xf32>
    %9 = arith.mulf %8, %5 : vector<48x128xf32>
    %10 = arith.select %7, %5, %9 : vector<48x128xi1>, vector<48x128xf32>
    %11 = arith.truncf %10 : vector<48x128xf32> to vector<48x128xbf16>
    %c0_7 = arith.constant 0 : index
    %c0_8 = arith.constant 0 : index
    %12 = vector.load %arg5[%c0_7, %c0_8] : memref<48x128xbf16, #tpu.memory_space<vmem>>, vector<48x128xbf16>
    tpu.vector_store %arg5[%c0_7, %c0_8], %11 {strides = array<i32>} : memref<48x128xbf16, #tpu.memory_space<vmem>>, vector<48x128xbf16>,
    return
  }
  func.func @transform_0(%arg0: i32, %arg1: i32) -> (i32, i32) {
    %c0_i32 = arith.constant 0 : i32
    %c0_i32_0 = arith.constant 0 : i32
    return %arg1, %c0_i32 : i32, i32
  }
  func.func @transform_1(%arg0: i32, %arg1: i32) -> (i32, i32) {
    %c0_i32 = arith.constant 0 : i32
    %c0_i32_0 = arith.constant 0 : i32
    return %c0_i32, %arg0 : i32, i32
  }
  func.func @transform_2(%arg0: i32, %arg1: i32) -> (i32, i32) {
    %c0_i32 = arith.constant 0 : i32
    %c0_i32_0 = arith.constant 0 : i32
    return %c0_i32, %arg0 : i32, i32
  }
  func.func @transform_3(%arg0: i32, %arg1: i32) -> (i32, i32) {
    %c0_i32 = arith.constant 0 : i32
    return %arg1, %arg0 : i32, i32
  }
}

</mosaic_0001>

<llo_original>
// kernel: tpu_custom_call.1
$region0: #{tpu_custom_call.1}
  #allocation0 [shape = 'u32[]', space=smem, size = 0x4, offset = 0x4, fixed_abs, tag = 'smem constant byte address 0x4 - core index']
  #allocation1 [shape = 'u32[144,128]{1,0:T(1,128)}', space=vmem, size = 0x12000, scoped, tag = 'internal scratch']
  %s0 = inlined_call_operand.vmem [shape: bf16[48,40], index: 0, kind: input, shape index: {}]
  %s1 = inlined_call_operand.vmem [shape: bf16[40,128], index: 1, kind: input, shape index: {}]
  %s2 = inlined_call_operand.vmem [shape: f32[1,128], index: 2, kind: input, shape index: {}]
  %s3 = inlined_call_operand.hbm [shape: bf16[48,128], index: 3, kind: output, shape index: {}]
  %s4 = sld [smem:[#allocation0]]
  $region22: #{tpu_custom_call.1} parent=0
    _
  %s6 = ssub.s32 1, %s4
  %s7 = scalar_select 0, %s6, %s4
  $region1: #{tpu_custom_call.1} parent=0
    #allocation2 [shape = 'u8[12288]{0}', space=vmem, size = 0x3000, scoped, tag = 'output window, operand 0, single buffered']
    #allocation3 [shape = 's32[1]{0}', space=sflag, size = 0x4, scoped, tag = 'scoped memory for tpu_custom_call.1']
    %8 = vsyncpa [#allocation3], 0
    // Predicated region
    $region2: #{tpu_custom_call.1} parent=1 // pred_check
      _
    $region3: #{tpu_custom_call.1} parent=1 // pred_check_branch
      %10 = sbr.rel (0) target = $region5
    $region4: #{tpu_custom_call.1} parent=1 // pred_region
      _
    $region5: #{tpu_custom_call.1} parent=1 // pred_fallthru
      _
    // Predicated region
    $region6: #{tpu_custom_call.1} parent=1 // pred_check
      _
    $region7: #{tpu_custom_call.1} parent=1 // pred_check_branch
      %12 = sbr.rel (0) target = $region9
    $region8: #{tpu_custom_call.1} parent=1 // pred_region
      _
    $region9: #{tpu_custom_call.1} parent=1 // pred_fallthru
      _
    // Predicated region
    $region10: #{tpu_custom_call.1} parent=1 // pred_check
      _
    $region11: #{tpu_custom_call.1} parent=1 // pred_check_branch
      %14 = sbr.rel (0) target = $region13
    $region12: #{tpu_custom_call.1} parent=1 // pred_region
      _
    $region13: #{tpu_custom_call.1} parent=1 // pred_fallthru
      _
    %v16 = vld [vmem:[%s0] sm:$0xf]
    %v17 = vld [vmem:[%s0 + $0x4] sm:$0xf]
    %v18 = vld [vmem:[%s0 + $0x8] sm:$0xf]
    %v19 = vld [vmem:[%s0 + $0xc] sm:$0xf]
    %v20 = vld [vmem:[%s0 + $0x10] sm:$0xf]
    %v21 = vld [vmem:[%s0 + $0x14] sm:$0xf]
    %v22 = vld [vmem:[%s1] sm:$0xf]
    %v23 = vld [vmem:[%s1 + $0x4] sm:$0xf]
    %v24 = vld [vmem:[%s1 + $0x8] sm:$0xf]
    %v25 = vld [vmem:[%s1 + $0xc] sm:$0xf]
    %v26 = vld [vmem:[%s1 + $0x10] sm:$0xf]
    %v27 = vld [vmem:[%s2] sm:$0x1]
    %v29 = vlaneseq
    %v30 = vshrl.u32 %v29, 7
    %v31 = vsub.s32 0, %v30
    %v32 = vrot.slane %v27, %v31
    %v40 = vunpack.c.l.b16 %v16
    %v41 = vunpack.c.l.b16 %v17
    %v42 = vunpack.c.l.b16 %v18
    %v43 = vunpack.c.l.b16 %v19
    %v44 = vunpack.c.l.b16 %v20
    %v45 = vunpack.c.l.b16 %v21
    %v46 = vpack.c.b16 %v41, %v40
    %v47 = vpack.c.b16 %v43, %v42
    %v48 = vpack.c.b16 %v45, %v44
    %v54 = vunpack.c.l.b16 %v22
    %v55 = vunpack.c.l.b16 %v23
    %v56 = vunpack.c.l.b16 %v24
    %v57 = vunpack.c.l.b16 %v25
    %v58 = vunpack.c.l.b16 %v26
    %v59 = vpack.c.b16 %v55, %v54
    %v60 = vpack.c.b16 %v57, %v56
    %v61 = vpack.c.b16 %v58, %v58
    %vm64 = vcmask 326656
    %v66 = vsel %vm64, %v46, 0
    %v69 = vsel %vm64, %v47, 0
    %v72 = vsel %vm64, %v48, 0
    %vm74 = vcmask 1043456
    %v76 = vsel %vm74, %v61, 0
    %78 = vmatprep.subr.bf16.mxu0 0
    %79 = vmatpush1.bf16.msra.mxu0 %v59
    %80 = vmatprep.subr.bf16.mxu0 0
    %81 = vmatpush1.bf16.msra.mxu0 %v60
    %82 = vmatprep.subr.bf16.mxu0 0
    %83 = vmatpush1.bf16.msra.mxu0 %v76
    %84 = vmatprep.subr.bf16.mxu0 0
    %85 = vmatpush1.bf16.msra.mxu0 0
    %86 = vmatprep.subr.bf16.mxu0 0
    %87 = vmatpush1.bf16.msra.mxu0 0
    %88 = vmatprep.subr.bf16.mxu0 0
    %89 = vmatpush1.bf16.msra.mxu0 0
    %90 = vmatprep.subr.bf16.mxu0 0
    %91 = vmatpush1.bf16.msra.mxu0 0
    %92 = vmatprep.subr.bf16.mxu0 0
    %93 = vmatpush1.bf16.msra.mxu0 0
    %94 = vmatprep.subr.bf16.mxu0 0
    %95 = vmatpush1.bf16.msra.mxu0 0
    %96 = vmatprep.subr.bf16.mxu0 0
    %97 = vmatpush1.bf16.msra.mxu0 0
    %98 = vmatprep.subr.bf16.mxu0 0
    %99 = vmatpush1.bf16.msra.mxu0 0
    %100 = vmatprep.subr.bf16.mxu0 0
    %101 = vmatpush1.bf16.msra.mxu0 0
    %102 = vmatprep.subr.bf16.mxu0 0
    %103 = vmatpush1.bf16.msra.mxu0 0
    %104 = vmatprep.subr.bf16.mxu0 0
    %105 = vmatpush1.bf16.msra.mxu0 0
    %106 = vmatprep.subr.bf16.mxu0 0
    %107 = vmatpush1.bf16.msra.mxu0 0
    %108 = vmatprep.subr.bf16.mxu0 0
    %109 = vmatpush1.bf16.msra.mxu0 0
    %110 = vmatprep.mubr.bf16.mxu0 0
    %111 = vmatmul.mubr.bf16.gmra.mrb[0].mxu0 %v66
    %v112 = vpop.f32.mrb[0].mxu0
    %v113 = vadd.f32 %v32, %v112
    %v114 = vpop.f32.mrb[0].mxu0
    %v115 = vpop.f32.mrb[0].mxu0
    %v116 = vadd.f32 %v32, %v115
    %v117 = vpop.f32.mrb[0].mxu0
    %118 = vmatprep.mubr.bf16.mxu0 0
    %119 = vmatmul.mubr.bf16.gmra.mrb[0].mxu0 %v69
    %v120 = vpop.f32.mrb[0].mxu0
    %v121 = vadd.f32 %v32, %v120
    %v122 = vpop.f32.mrb[0].mxu0
    %v123 = vpop.f32.mrb[0].mxu0
    %v124 = vadd.f32 %v32, %v123
    %v125 = vpop.f32.mrb[0].mxu0
    %126 = vmatprep.mubr.bf16.mxu0 0
    %127 = vmatmul.mubr.bf16.gmra.mrb[0].mxu0 %v72
    %v128 = vpop.f32.mrb[0].mxu0
    %v129 = vadd.f32 %v32, %v128
    %v130 = vpop.f32.mrb[0].mxu0
    %v131 = vpop.f32.mrb[0].mxu0
    %v132 = vadd.f32 %v32, %v131
    %v133 = vpop.f32.mrb[0].mxu0
    %134 = vdwg.mxu0
    %vm135 = vcmp.ge.f32.partialorder %v113, 0.0
    %vm136 = vcmp.ge.f32.partialorder %v116, 0.0
    %vm137 = vcmp.ge.f32.partialorder %v121, 0.0
    %vm138 = vcmp.ge.f32.partialorder %v124, 0.0
    %vm139 = vcmp.ge.f32.partialorder %v129, 0.0
    %vm140 = vcmp.ge.f32.partialorder %v132, 0.0
    %v141 = vmul.f32 %v113, 0.1
    %v142 = vmul.f32 %v116, 0.1
    %v143 = vmul.f32 %v121, 0.1
    %v144 = vmul.f32 %v124, 0.1
    %v145 = vmul.f32 %v129, 0.1
    %v146 = vmul.f32 %v132, 0.1
    %v147 = vsel %vm135, %v113, %v141
    %v148 = vsel %vm136, %v116, %v142
    %v149 = vsel %vm137, %v121, %v143
    %v150 = vsel %vm138, %v124, %v144
    %v151 = vsel %vm139, %v129, %v145
    %v152 = vsel %vm140, %v132, %v146
    %v153 = vpack.c.bf16 %v148, %v147
    %v154 = vpack.c.bf16 %v150, %v149
    %v155 = vpack.c.bf16 %v152, %v151
    %v159 = vunpack.c.l.b16 %v153
    %v160 = vunpack.c.h.b16 %v153
    %v161 = vunpack.c.l.b16 %v154
    %v162 = vunpack.c.h.b16 %v154
    %v163 = vunpack.c.l.b16 %v155
    %v164 = vunpack.c.h.b16 %v155
    %v165 = vpack.c.b16 %v159, %v159
    %v166 = vpack.c.b16 %v160, %v160
    %v167 = vpack.c.b16 %v161, %v161
    %v168 = vpack.c.b16 %v162, %v162
    %v169 = vpack.c.b16 %v163, %v163
    %v170 = vpack.c.b16 %v164, %v164
    %177 = vst [vmem:[#allocation2] sm:$0xf] %v165
    %178 = vst [vmem:[#allocation2 + $0x4] sm:$0xf] %v166
    %179 = vst [vmem:[#allocation2 + $0x8] sm:$0xf] %v167
    %180 = vst [vmem:[#allocation2 + $0xc] sm:$0xf] %v168
    %181 = vst [vmem:[#allocation2 + $0x10] sm:$0xf] %v169
    %182 = vst [vmem:[#allocation2 + $0x14] sm:$0xf] %v170
    // Predicated region
    $region14: #{tpu_custom_call.1} parent=1 // pred_check
      _
    $region15: #{tpu_custom_call.1} parent=1 // pred_check_branch
      %184 = sbr.rel (0) target = $region17
    $region16: #{tpu_custom_call.1} parent=1 // pred_region
      %s186 = ssub.s32 384, 384
      %187 = vsyncadd [#allocation3], %s186
      %s188 = sshll.u32 [#allocation2], 4
      %s189 = int_to_ptr.vmem [resolvable:$true] %s188
      %194 = dma.vmem_to_hbm [thread:$0]  %s189, 384, %s3, [#allocation3], 64, 64, 4
    $region17: #{tpu_custom_call.1} parent=1 // pred_fallthru
      _
    // Predicated region
    $region18: #{tpu_custom_call.1} parent=1 // pred_check
      _
    $region19: #{tpu_custom_call.1} parent=1 // pred_check_branch
      %196 = sbr.rel (0) target = $region21
    $region20: #{tpu_custom_call.1} parent=1 // pred_region
      %197 = dma.done [#allocation3], 384
    $region21: #{tpu_custom_call.1} parent=1 // pred_fallthru
      _
    %198 = vsyncpa [#allocation3], 1

</llo_original>
